<compile_context>
chip_gen: v5e
topology: v5e:2x2
jax: 0.10.0
libtpu: 0.0.40
codegen_flags: <defaults>
</compile_context>

<pallas_src>
import functools

import jax
import jax.numpy as jnp
from jax.experimental import pallas as pl
from jax.experimental.pallas import tpu as pltpu


# ---------------------------------------------------------------------------
# small helpers
# ---------------------------------------------------------------------------
def _round_up(x, m):
    return ((x + m - 1) // m) * m


def _pick_tile(Lpad, p, per_col_bytes, budget=32 << 20):
    """Largest lane-dense time tile that divides Lpad, is >= p and fits budget."""
    cands = [t for t in (2048, 1024, 512, 256, 128) if Lpad % t == 0 and t >= p]
    if not cands:
        cands = [Lpad]                         # single tile covers everything
    for t in cands:                            # largest first
        if t * per_col_bytes <= budget:
            return t
    return cands[-1]


def _compiler_params(step_bytes):
    """Grid semantics + a generation-aware VMEM hint only when blocks are big."""
    kwargs = dict(dimension_semantics=("parallel", "arbitrary"))
    if step_bytes > (24 << 20):
        cap = 48 << 20                         # conservative default (v7x-safe)
        try:
            cap = int(0.75 * pltpu.get_tpu_info().vmem_capacity_bytes)
        except Exception:
            pass
        kwargs["vmem_limit_bytes"] = int(min(step_bytes + (4 << 20), cap))
    return pltpu.CompilerParams(**kwargs)


def fold_weight_norm(v, g):
    # PyTorch weight_norm (dim=0): w = g * v / ||v||, norm over all dims but 0.
    norm = jnp.sqrt(jnp.sum(v * v, axis=(1, 2), keepdims=True))
    # guard against an all-zero filter row (PyTorch would produce NaN here).
    return g * v / jnp.maximum(norm, 1e-30)


def fold_batch_norm(gamma, beta, mean, var, eps=1e-5):
    # eval-mode BatchNorm1d folded to per-channel scale/shift.
    scale = gamma * jax.lax.rsqrt(var + eps)
    return scale, beta - mean * scale


# ---------------------------------------------------------------------------
# Fused kernel: conv1 + tanh + BN1  ->  conv2 + tanh + BN2  ->  +res  ->  tanh
# Grid = (batch, time-tiles).  The time axis is "arbitrary": the last p columns
# of x and of h1 are carried across tiles in VMEM scratch (zero at j == 0,
# which is exactly the causal zero padding of both convs — no masking needed).
# ---------------------------------------------------------------------------
def _temporal_block_kernel(x_ref, w1_ref, b1_ref, sc1_ref, sh1_ref,
                           w2_ref, b2_ref, sc2_ref, sh2_ref, *rest,
                           K, dilation, pad, fuse1, fuse2, has_down):
    if has_down:
        wd_ref, bd_ref, y_ref, xbuf, h1buf = rest
    else:
        y_ref, xbuf, h1buf = rest

    j = pl.program_id(1)
    Co, tile = y_ref.shape
    Ci = x_ref.shape[0]
    d, p = dilation, pad

    # streamed per-tile x: f32 for the residual, bf16 copy for the MXU.
    x_f32 = x_ref[...]
    x_bf = x_f32.astype(jnp.bfloat16)

    # j == 0: the carried halo is the causal zero padding of both convs.
    if p > 0:
        @pl.when(j == 0)
        def _init_halo():
            xbuf[:, 0:p] = jnp.zeros((Ci, p), xbuf.dtype)
            h1buf[:, 0:p] = jnp.zeros((Co, p), h1buf.dtype)

    xbuf[:, p:p + tile] = x_bf

    def causal_conv(win, w_ref, C, fuse):
        # win: (C, tile+p) bf16 window [halo | current tile]
        # w_ref: (Co, K*C) bf16, column order (tap-major, then channel)
        if fuse and K > 1:
            # im2col-style tap fusion: one 256-deep MXU dot instead of K dots.
            xcat = jnp.concatenate(
                [win[:, k * d:k * d + tile] for k in range(K)], axis=0)
            return jnp.dot(w_ref[...], xcat, preferred_element_type=jnp.float32)
        acc = jnp.dot(w_ref[:, 0:C], win[:, 0:tile],
                      preferred_element_type=jnp.float32)
        for k in range(1, K):
            acc += jnp.dot(w_ref[:, k * C:(k + 1) * C],
                           win[:, k * d:k * d + tile],
                           preferred_element_type=jnp.float32)
        return acc

    # ---- conv1 + bias + tanh + BN1 ------------------------------------------
    # TODO(synk): nn.Dropout is identity in eval mode; training-mode RNG dropout
    # (and training-mode batch statistics) are not implemented.
    h1 = causal_conv(xbuf[...], w1_ref, Ci, fuse1)
    h1 = jnp.tanh(h1 + b1_ref[...])
    h1 = h1 * sc1_ref[...] + sh1_ref[...]
    h1_bf = h1.astype(jnp.bfloat16)
    h1buf[:, p:p + tile] = h1_bf

    # ---- conv2 + bias + tanh + BN2 ------------------------------------------
    o = causal_conv(h1buf[...], w2_ref, Co, fuse2)
    o = jnp.tanh(o + b2_ref[...])
    o = o * sc2_ref[...] + sh2_ref[...]

    # ---- residual (1x1 downsample conv or f32 identity) + final tanh --------
    if has_down:
        res = jnp.dot(wd_ref[...], x_bf,
                      preferred_element_type=jnp.float32) + bd_ref[...]
    else:
        res = x_f32
    y_ref[...] = jnp.tanh(o + res).astype(y_ref.dtype)

    # ---- carry the last p columns of x and h1 into the next time tile -------
    if p > 0:
        xbuf[:, 0:p] = x_bf[:, tile - p:tile]
        h1buf[:, 0:p] = h1_bf[:, tile - p:tile]


# ---------------------------------------------------------------------------
# Wrapper: weight-norm / BN folding, padding, tiling, pallas_call
# ---------------------------------------------------------------------------
def temporal_block_forward(x, params, *, kernel_size, dilation, padding,
                           out_dtype=jnp.bfloat16):
    N, Ci, L = x.shape
    K, d, p = kernel_size, dilation, padding
    assert p == d * (K - 1), "residual add requires causal TCN padding p = d*(K-1)"
    Co = params["conv1_v"].shape[0]
    has_down = params.get("down_w") is not None
    if not has_down:
        assert Ci == Co, "identity residual requires n_inputs == n_outputs"

    # fold weight_norm (f32), reorder to (Co, K*C) tap-major, cast to bf16.
    w1 = fold_weight_norm(params["conv1_v"], params["conv1_g"])          # (Co,Ci,K)
    w2 = fold_weight_norm(params["conv2_v"], params["conv2_g"])          # (Co,Co,K)
    w1_2d = jnp.transpose(w1, (0, 2, 1)).reshape(Co, K * Ci).astype(jnp.bfloat16)
    w2_2d = jnp.transpose(w2, (0, 2, 1)).reshape(Co, K * Co).astype(jnp.bfloat16)

    # fold eval-mode BatchNorm into per-channel scale/shift (f32 epilogue).
    sc1, sh1 = fold_batch_norm(params["bn1_gamma"], params["bn1_beta"],
                               params["bn1_mean"], params["bn1_var"])
    sc2, sh2 = fold_batch_norm(params["bn2_gamma"], params["bn2_beta"],
                               params["bn2_mean"], params["bn2_var"])

    # lane-dense tiling: pad L up to a multiple of 128, slice the tail at the end.
    out_bytes = jnp.dtype(out_dtype).itemsize
    Lpad = _round_up(max(L, max(p, 1)), 128)
    per_col_bytes = 2 * (Ci * 4 + Co * out_bytes) + (Ci + Co) * 2
    tile = _pick_tile(Lpad, p, per_col_bytes)
    assert tile >= p, "time tile must cover the causal halo"

    xpad = x if Lpad == L else jnp.pad(x, ((0, 0), (0, 0), (0, Lpad - L)))
    xpad = xpad.astype(jnp.float32)            # residual read in f32

    # im2col tap fusion only when it actually fills the MXU and is sublane-aligned.
    fuse1 = (K > 1) and (Ci % 16 == 0) and (Ci < 256)
    fuse2 = (K > 1) and (Co % 16 == 0) and (Co < 256)

    pspec = pl.BlockSpec((Co, 1), lambda n, j: (0, 0))
    in_specs = [
        pl.BlockSpec((None, Ci, tile), lambda n, j: (n, 0, j)),   # streamed x tile
        pl.BlockSpec((Co, K * Ci), lambda n, j: (0, 0)),          # conv1 weight
        pspec, pspec, pspec,                                      # b1, sc1, sh1
        pl.BlockSpec((Co, K * Co), lambda n, j: (0, 0)),          # conv2 weight
        pspec, pspec, pspec,                                      # b2, sc2, sh2
    ]
    args = [xpad, w1_2d, params["conv1_b"], sc1, sh1,
            w2_2d, params["conv2_b"], sc2, sh2]
    if has_down:
        in_specs += [pl.BlockSpec((Co, Ci), lambda n, j: (0, 0)), pspec]
        args += [params["down_w"].astype(jnp.bfloat16), params["down_b"]]

    # rough per-step VMEM footprint (double-buffered streamed blocks + scratch).
    step_bytes = (2 * (Ci * tile * 4 + Co * tile * out_bytes
                       + (K * Ci + K * Co + (Ci if has_down else 0)) * Co * 2)
                  + (Ci + Co) * (tile + p) * 2)

    # TODO(synk): for tiny workloads (Co <= 64, short L) block several batch
    # elements per grid step to amortize per-step overhead; for Co >= 512 add an
    # output-channel grid axis so the f32 epilogue block stays register-sized.
    grid = (N, Lpad // tile)
    y = pl.pallas_call(
        functools.partial(_temporal_block_kernel, K=K, dilation=d, pad=p,
                          fuse1=fuse1, fuse2=fuse2, has_down=has_down),
        out_shape=jax.ShapeDtypeStruct((N, Co, Lpad), out_dtype),
        grid=grid,
        in_specs=in_specs,
        out_specs=pl.BlockSpec((None, Co, tile), lambda n, j: (n, 0, j)),
        scratch_shapes=[pltpu.VMEM((Ci, tile + p), jnp.bfloat16),   # x halo+tile
                        pltpu.VMEM((Co, tile + p), jnp.bfloat16)],  # h1 halo+tile
        compiler_params=_compiler_params(step_bytes),
    )(*args)
    return y if Lpad == L else y[:, :, :L]


# ---------------------------------------------------------------------------
# Pure-JAX reference (eval mode) for a numerical sanity check
# ---------------------------------------------------------------------------
def temporal_block_reference(x, params, *, kernel_size, dilation, padding):
    K, d, p = kernel_size, dilation, padding
    eps = 1e-5

    def block(inp, v, g, b, gamma, beta, mean, var):
        w = fold_weight_norm(v, g)
        h = jax.lax.conv_general_dilated(
            inp, w, window_strides=(1,), padding=[(p, p)], rhs_dilation=(d,),
            dimension_numbers=("NCH", "OIH", "NCH"))
        h = h + b
        h = h[:, :, :h.shape[2] - p]                 # chomp
        h = jnp.tanh(h)                              # dropout = identity (eval)
        return (h - mean) * jax.lax.rsqrt(var + eps) * gamma + beta

    h1 = block(x, params["conv1_v"], params["conv1_g"], params["conv1_b"],
               params["bn1_gamma"], params["bn1_beta"],
               params["bn1_mean"], params["bn1_var"])
    h2 = block(h1, params["conv2_v"], params["conv2_g"], params["conv2_b"],
               params["bn2_gamma"], params["bn2_beta"],
               params["bn2_mean"], params["bn2_var"])
    if params.get("down_w") is not None:
        res = jnp.einsum("oc,ncl->nol", params["down_w"], x) + params["down_b"]
    else:
        res = x
    return jnp.tanh(h2 + res)


# ---------------------------------------------------------------------------
# Deterministic synthetic parameters + example run
# ---------------------------------------------------------------------------
if __name__ == "__main__":
    def make_params(key, Ci, Co, K, with_down):
        ks = jax.random.split(key, 17)
        f32 = jnp.float32
        params = dict(
            conv1_v=0.01 * jax.random.normal(ks[0], (Co, Ci, K), f32),
            conv1_g=0.5 + jnp.abs(jax.random.normal(ks[1], (Co, 1, 1), f32)),
            conv1_b=0.1 * jax.random.normal(ks[2], (Co, 1), f32),
            bn1_gamma=1.0 + 0.1 * jax.random.normal(ks[3], (Co, 1), f32),
            bn1_beta=0.1 * jax.random.normal(ks[4], (Co, 1), f32),
            bn1_mean=0.1 * jax.random.normal(ks[5], (Co, 1), f32),
            bn1_var=1.0 + 0.1 * jnp.abs(jax.random.normal(ks[6], (Co, 1), f32)),
            conv2_v=0.01 * jax.random.normal(ks[7], (Co, Co, K), f32),
            conv2_g=0.5 + jnp.abs(jax.random.normal(ks[8], (Co, 1, 1), f32)),
            conv2_b=0.1 * jax.random.normal(ks[9], (Co, 1), f32),
            bn2_gamma=1.0 + 0.1 * jax.random.normal(ks[10], (Co, 1), f32),
            bn2_beta=0.1 * jax.random.normal(ks[11], (Co, 1), f32),
            bn2_mean=0.1 * jax.random.normal(ks[12], (Co, 1), f32),
            bn2_var=1.0 + 0.1 * jnp.abs(jax.random.normal(ks[13], (Co, 1), f32)),
        )
        if with_down:
            params["down_w"] = 0.01 * jax.random.normal(ks[14], (Co, Ci), f32)
            params["down_b"] = 0.1 * jax.random.normal(ks[15], (Co, 1), f32)
        else:
            params["down_w"] = None
            params["down_b"] = None
        return params, ks[16]

    K, d = 3, 2
    p = (K - 1) * d                        # classic causal-TCN padding

    # case 1: n_inputs != n_outputs -> 1x1 downsample residual.  L = 300 is not
    # a multiple of 128 and spans several time tiles, so this exercises the
    # lane-dense padding + slice and the cross-tile halo carry.
    N, Ci, Co, L = 2, 4, 8, 300
    params, kx = make_params(jax.random.PRNGKey(0), Ci, Co, K, with_down=True)
    x = jax.random.normal(kx, (N, Ci, L), jnp.float32)
    y = temporal_block_forward(x, params, kernel_size=K, dilation=d, padding=p)
    jax.block_until_ready(y)
    assert y.shape == (N, Co, L) and y.dtype == jnp.bfloat16
    y_ref = temporal_block_reference(x, params, kernel_size=K, dilation=d, padding=p)
    err = float(jnp.max(jnp.abs(y.astype(jnp.float32) - y_ref)))
    assert err < 1e-1, f"downsample case mismatch vs reference: max abs err {err}"

    # case 2: n_inputs == n_outputs -> identity residual (added in f32).
    N2, C2, L2 = 2, 8, 16
    params2, kx2 = make_params(jax.random.PRNGKey(1), C2, C2, K, with_down=False)
    x2 = jax.random.normal(kx2, (N2, C2, L2), jnp.float32)
    y2 = temporal_block_forward(x2, params2, kernel_size=K, dilation=d, padding=p)
    jax.block_until_ready(y2)
    assert y2.shape == (N2, C2, L2) and y2.dtype == jnp.bfloat16
    y2_ref = temporal_block_reference(x2, params2, kernel_size=K, dilation=d, padding=p)
    err2 = float(jnp.max(jnp.abs(y2.astype(jnp.float32) - y2_ref)))
    assert err2 < 1e-1, f"identity case mismatch vs reference: max abs err {err2}"

    print("KERNEL_OK")
</pallas_src>

<mosaic_0001>
module attributes {stable_mosaic.version = 11 : i64} {
  func.func @_temporal_block_kernel(%arg0: i32, %arg1: i32, %arg2: memref<1x4x128xf32, #tpu.memory_space<vmem>>, %arg3: memref<8x12xbf16, #tpu.memory_space<vmem>>, %arg4: memref<8x1xf32, #tpu.memory_space<vmem>>, %arg5: memref<8x1xf32, #tpu.memory_space<vmem>>, %arg6: memref<8x1xf32, #tpu.memory_space<vmem>>, %arg7: memref<8x24xbf16, #tpu.memory_space<vmem>>, %arg8: memref<8x1xf32, #tpu.memory_space<vmem>>, %arg9: memref<8x1xf32, #tpu.memory_space<vmem>>, %arg10: memref<8x1xf32, #tpu.memory_space<vmem>>, %arg11: memref<8x4xbf16, #tpu.memory_space<vmem>>, %arg12: memref<8x1xf32, #tpu.memory_space<vmem>>, %arg13: memref<1x8x128xbf16, #tpu.memory_space<vmem>>, %arg14: memref<4x132xbf16, #tpu.memory_space<vmem>>, %arg15: memref<8x132xbf16, #tpu.memory_space<vmem>>) attributes {dimension_semantics = [#tpu.dimension_semantics<parallel>, #tpu.dimension_semantics<arbitrary>], iteration_bounds = array<i64: 2, 3>, scalar_prefetch = 0 : i64, scratch_operands = 2 : i64, tpu.core_type = #tpu.core_type<tc>, window_params = [{transform_indices = @transform_0, window_bounds = array<i64: 1, 4, 128>}, {pipeline_mode = #tpu.pipeline_mode<synchronous>, transform_indices = @transform_1, window_bounds = array<i64: 8, 12>}, {pipeline_mode = #tpu.pipeline_mode<synchronous>, transform_indices = @transform_2, window_bounds = array<i64: 8, 1>}, {pipeline_mode = #tpu.pipeline_mode<synchronous>, transform_indices = @transform_3, window_bounds = array<i64: 8, 1>}, {pipeline_mode = #tpu.pipeline_mode<synchronous>, transform_indices = @transform_4, window_bounds = array<i64: 8, 1>}, {pipeline_mode = #tpu.pipeline_mode<synchronous>, transform_indices = @transform_5, window_bounds = array<i64: 8, 24>}, {pipeline_mode = #tpu.pipeline_mode<synchronous>, transform_indices = @transform_6, window_bounds = array<i64: 8, 1>}, {pipeline_mode = #tpu.pipeline_mode<synchronous>, transform_indices = @transform_7, window_bounds = array<i64: 8, 1>}, {pipeline_mode = #tpu.pipeline_mode<synchronous>, transform_indices = @transform_8, window_bounds = array<i64: 8, 1>}, {pipeline_mode = #tpu.pipeline_mode<synchronous>, transform_indices = @transform_9, window_bounds = array<i64: 8, 4>}, {pipeline_mode = #tpu.pipeline_mode<synchronous>, transform_indices = @transform_10, window_bounds = array<i64: 8, 1>}, {transform_indices = @transform_11, window_bounds = array<i64: 1, 8, 128>}]} {
    %c0 = arith.constant 0 : index
    %c0_0 = arith.constant 0 : index
    %c0_1 = arith.constant 0 : index
    %0 = vector.load %arg2[%c0, %c0_0, %c0_1] : memref<1x4x128xf32, #tpu.memory_space<vmem>>, vector<1x4x128xf32>
    %1 = vector.shape_cast %0 : vector<1x4x128xf32> to vector<4x128xf32>
    %2 = arith.truncf %1 : vector<4x128xf32> to vector<4x128xbf16>
    %c0_i32 = arith.constant 0 : i32
    %3 = arith.cmpi eq, %arg1, %c0_i32 : i32
    %4 = arith.extui %3 : i1 to i32
    %c0_i32_2 = arith.constant 0 : i32
    %5 = arith.cmpi ne, %4, %c0_i32_2 : i32
    scf.if %5 {
      %cst_49 = arith.constant 0.000000e+00 : bf16
      %68 = vector.broadcast %cst_49 : bf16 to vector<4x4xbf16>
      %c0_50 = arith.constant 0 : index
      %c0_51 = arith.constant 0 : index
      %69 = vector.load %arg14[%c0_50, %c0_51] : memref<4x132xbf16, #tpu.memory_space<vmem>>, vector<4x4xbf16>
      tpu.vector_store %arg14[%c0_50, %c0_51], %68 {strides = array<i32>} : memref<4x132xbf16, #tpu.memory_space<vmem>>, vector<4x4xbf16>,
      %cst_52 = arith.constant 0.000000e+00 : bf16
      %70 = vector.broadcast %cst_52 : bf16 to vector<8x4xbf16>
      %c0_53 = arith.constant 0 : index
      %c0_54 = arith.constant 0 : index
      %71 = vector.load %arg15[%c0_53, %c0_54] : memref<8x132xbf16, #tpu.memory_space<vmem>>, vector<8x4xbf16>
      tpu.vector_store %arg15[%c0_53, %c0_54], %70 {strides = array<i32>} : memref<8x132xbf16, #tpu.memory_space<vmem>>, vector<8x4xbf16>,
    } else {
    }
    %c0_3 = arith.constant 0 : index
    %c4 = arith.constant 4 : index
    %6 = vector.load %arg14[%c0_3, %c4] : memref<4x132xbf16, #tpu.memory_space<vmem>>, vector<4x128xbf16>
    tpu.vector_store %arg14[%c0_3, %c4], %2 {strides = array<i32>} : memref<4x132xbf16, #tpu.memory_space<vmem>>, vector<4x128xbf16>,
    %c0_4 = arith.constant 0 : index
    %c0_5 = arith.constant 0 : index
    %7 = vector.load %arg14[%c0_4, %c0_5] : memref<4x132xbf16, #tpu.memory_space<vmem>>, vector<4x132xbf16>
    %c0_6 = arith.constant 0 : index
    %c0_7 = arith.constant 0 : index
    %8 = vector.load %arg3[%c0_6, %c0_7] : memref<8x12xbf16, #tpu.memory_space<vmem>>, vector<8x4xbf16>
    %9 = vector.extract_strided_slice %7 {offsets = [0, 0], sizes = [4, 128], strides = [1, 1]} : vector<4x132xbf16> to vector<4x128xbf16>
    %cst = arith.constant dense<0.000000e+00> : vector<8x128xf32>
    %10 = tpu.matmul %8, %9, %cst {dimension_numbers = #tpu.dot_dimension_numbers<[1], [0], [0], [1], [0, 0, 1, 1], [], []>} : vector<8x4xbf16>, vector<4x128xbf16>, vector<8x128xf32> -> vector<8x128xf32>
    %c0_8 = arith.constant 0 : index
    %c4_9 = arith.constant 4 : index
    %11 = vector.load %arg3[%c0_8, %c4_9] : memref<8x12xbf16, #tpu.memory_space<vmem>>, vector<8x4xbf16>
    %12 = vector.extract_strided_slice %7 {offsets = [0, 2], sizes = [4, 128], strides = [1, 1]} : vector<4x132xbf16> to vector<4x128xbf16>
    %cst_10 = arith.constant dense<0.000000e+00> : vector<8x128xf32>
    %13 = tpu.matmul %11, %12, %cst_10 {dimension_numbers = #tpu.dot_dimension_numbers<[1], [0], [0], [1], [0, 0, 1, 1], [], []>} : vector<8x4xbf16>, vector<4x128xbf16>, vector<8x128xf32> -> vector<8x128xf32>
    %14 = arith.addf %10, %13 : vector<8x128xf32>
    %c0_11 = arith.constant 0 : index
    %c8 = arith.constant 8 : index
    %15 = vector.load %arg3[%c0_11, %c8] : memref<8x12xbf16, #tpu.memory_space<vmem>>, vector<8x4xbf16>
    %16 = vector.extract_strided_slice %7 {offsets = [0, 4], sizes = [4, 128], strides = [1, 1]} : vector<4x132xbf16> to vector<4x128xbf16>
    %cst_12 = arith.constant dense<0.000000e+00> : vector<8x128xf32>
    %17 = tpu.matmul %15, %16, %cst_12 {dimension_numbers = #tpu.dot_dimension_numbers<[1], [0], [0], [1], [0, 0, 1, 1], [], []>} : vector<8x4xbf16>, vector<4x128xbf16>, vector<8x128xf32> -> vector<8x128xf32>
    %18 = arith.addf %14, %17 : vector<8x128xf32>
    %c0_13 = arith.constant 0 : index
    %c0_14 = arith.constant 0 : index
    %19 = vector.load %arg4[%c0_13, %c0_14] : memref<8x1xf32, #tpu.memory_space<vmem>>, vector<8x1xf32>
    %20 = vector.broadcast %19 : vector<8x1xf32> to vector<8x128xf32>
    %21 = arith.addf %18, %20 : vector<8x128xf32>
    %22 = math.tanh %21 : vector<8x128xf32>
    %c0_15 = arith.constant 0 : index
    %c0_16 = arith.constant 0 : index
    %23 = vector.load %arg5[%c0_15, %c0_16] : memref<8x1xf32, #tpu.memory_space<vmem>>, vector<8x1xf32>
    %24 = vector.broadcast %23 : vector<8x1xf32> to vector<8x128xf32>
    %25 = arith.mulf %22, %24 : vector<8x128xf32>
    %c0_17 = arith.constant 0 : index
    %c0_18 = arith.constant 0 : index
    %26 = vector.load %arg6[%c0_17, %c0_18] : memref<8x1xf32, #tpu.memory_space<vmem>>, vector<8x1xf32>
    %27 = vector.broadcast %26 : vector<8x1xf32> to vector<8x128xf32>
    %28 = arith.addf %25, %27 : vector<8x128xf32>
    %29 = arith.truncf %28 : vector<8x128xf32> to vector<8x128xbf16>
    %c0_19 = arith.constant 0 : index
    %c4_20 = arith.constant 4 : index
    %30 = vector.load %arg15[%c0_19, %c4_20] : memref<8x132xbf16, #tpu.memory_space<vmem>>, vector<8x128xbf16>
    tpu.vector_store %arg15[%c0_19, %c4_20], %29 {strides = array<i32>} : memref<8x132xbf16, #tpu.memory_space<vmem>>, vector<8x128xbf16>,
    %c0_21 = arith.constant 0 : index
    %c0_22 = arith.constant 0 : index
    %31 = vector.load %arg15[%c0_21, %c0_22] : memref<8x132xbf16, #tpu.memory_space<vmem>>, vector<8x132xbf16>
    %c0_23 = arith.constant 0 : index
    %c0_24 = arith.constant 0 : index
    %32 = vector.load %arg7[%c0_23, %c0_24] : memref<8x24xbf16, #tpu.memory_space<vmem>>, vector<8x8xbf16>
    %33 = vector.extract_strided_slice %31 {offsets = [0, 0], sizes = [8, 128], strides = [1, 1]} : vector<8x132xbf16> to vector<8x128xbf16>
    %cst_25 = arith.constant dense<0.000000e+00> : vector<8x128xf32>
    %34 = tpu.matmul %32, %33, %cst_25 {dimension_numbers = #tpu.dot_dimension_numbers<[1], [0], [0], [1], [0, 0, 1, 1], [], []>} : vector<8x8xbf16>, vector<8x128xbf16>, vector<8x128xf32> -> vector<8x128xf32>
    %c0_26 = arith.constant 0 : index
    %c8_27 = arith.constant 8 : index
    %35 = vector.load %arg7[%c0_26, %c8_27] : memref<8x24xbf16, #tpu.memory_space<vmem>>, vector<8x8xbf16>
    %36 = vector.extract_strided_slice %31 {offsets = [0, 2], sizes = [8, 128], strides = [1, 1]} : vector<8x132xbf16> to vector<8x128xbf16>
    %cst_28 = arith.constant dense<0.000000e+00> : vector<8x128xf32>
    %37 = tpu.matmul %35, %36, %cst_28 {dimension_numbers = #tpu.dot_dimension_numbers<[1], [0], [0], [1], [0, 0, 1, 1], [], []>} : vector<8x8xbf16>, vector<8x128xbf16>, vector<8x128xf32> -> vector<8x128xf32>
    %38 = arith.addf %34, %37 : vector<8x128xf32>
    %c0_29 = arith.constant 0 : index
    %c16 = arith.constant 16 : index
    %39 = vector.load %arg7[%c0_29, %c16] : memref<8x24xbf16, #tpu.memory_space<vmem>>, vector<8x8xbf16>
    %40 = vector.extract_strided_slice %31 {offsets = [0, 4], sizes = [8, 128], strides = [1, 1]} : vector<8x132xbf16> to vector<8x128xbf16>
    %cst_30 = arith.constant dense<0.000000e+00> : vector<8x128xf32>
    %41 = tpu.matmul %39, %40, %cst_30 {dimension_numbers = #tpu.dot_dimension_numbers<[1], [0], [0], [1], [0, 0, 1, 1], [], []>} : vector<8x8xbf16>, vector<8x128xbf16>, vector<8x128xf32> -> vector<8x128xf32>
    %42 = arith.addf %38, %41 : vector<8x128xf32>
    %c0_31 = arith.constant 0 : index
    %c0_32 = arith.constant 0 : index
    %43 = vector.load %arg8[%c0_31, %c0_32] : memref<8x1xf32, #tpu.memory_space<vmem>>, vector<8x1xf32>
    %44 = vector.broadcast %43 : vector<8x1xf32> to vector<8x128xf32>
    %45 = arith.addf %42, %44 : vector<8x128xf32>
    %46 = math.tanh %45 : vector<8x128xf32>
    %c0_33 = arith.constant 0 : index
    %c0_34 = arith.constant 0 : index
    %47 = vector.load %arg9[%c0_33, %c0_34] : memref<8x1xf32, #tpu.memory_space<vmem>>, vector<8x1xf32>
    %48 = vector.broadcast %47 : vector<8x1xf32> to vector<8x128xf32>
    %49 = arith.mulf %46, %48 : vector<8x128xf32>
    %c0_35 = arith.constant 0 : index
    %c0_36 = arith.constant 0 : index
    %50 = vector.load %arg10[%c0_35, %c0_36] : memref<8x1xf32, #tpu.memory_space<vmem>>, vector<8x1xf32>
    %51 = vector.broadcast %50 : vector<8x1xf32> to vector<8x128xf32>
    %52 = arith.addf %49, %51 : vector<8x128xf32>
    %c0_37 = arith.constant 0 : index
    %c0_38 = arith.constant 0 : index
    %53 = vector.load %arg11[%c0_37, %c0_38] : memref<8x4xbf16, #tpu.memory_space<vmem>>, vector<8x4xbf16>
    %cst_39 = arith.constant dense<0.000000e+00> : vector<8x128xf32>
    %54 = tpu.matmul %53, %2, %cst_39 {dimension_numbers = #tpu.dot_dimension_numbers<[1], [0], [0], [1], [0, 0, 1, 1], [], []>} : vector<8x4xbf16>, vector<4x128xbf16>, vector<8x128xf32> -> vector<8x128xf32>
    %c0_40 = arith.constant 0 : index
    %c0_41 = arith.constant 0 : index
    %55 = vector.load %arg12[%c0_40, %c0_41] : memref<8x1xf32, #tpu.memory_space<vmem>>, vector<8x1xf32>
    %56 = vector.broadcast %55 : vector<8x1xf32> to vector<8x128xf32>
    %57 = arith.addf %54, %56 : vector<8x128xf32>
    %58 = arith.addf %52, %57 : vector<8x128xf32>
    %59 = math.tanh %58 : vector<8x128xf32>
    %60 = arith.truncf %59 : vector<8x128xf32> to vector<8x128xbf16>
    %c0_42 = arith.constant 0 : index
    %c0_43 = arith.constant 0 : index
    %c0_44 = arith.constant 0 : index
    %61 = vector.load %arg13[%c0_42, %c0_43, %c0_44] : memref<1x8x128xbf16, #tpu.memory_space<vmem>>, vector<1x8x128xbf16>
    %62 = vector.shape_cast %61 : vector<1x8x128xbf16> to vector<8x128xbf16>
    %63 = vector.shape_cast %60 : vector<8x128xbf16> to vector<1x8x128xbf16>
    tpu.vector_store %arg13[%c0_42, %c0_43, %c0_44], %63 {strides = array<i32>} : memref<1x8x128xbf16, #tpu.memory_space<vmem>>, vector<1x8x128xbf16>,
    %64 = vector.extract_strided_slice %2 {offsets = [0, 124], sizes = [4, 4], strides = [1, 1]} : vector<4x128xbf16> to vector<4x4xbf16>
    %c0_45 = arith.constant 0 : index
    %c0_46 = arith.constant 0 : index
    %65 = vector.load %arg14[%c0_45, %c0_46] : memref<4x132xbf16, #tpu.memory_space<vmem>>, vector<4x4xbf16>
    tpu.vector_store %arg14[%c0_45, %c0_46], %64 {strides = array<i32>} : memref<4x132xbf16, #tpu.memory_space<vmem>>, vector<4x4xbf16>,
    %66 = vector.extract_strided_slice %29 {offsets = [0, 124], sizes = [8, 4], strides = [1, 1]} : vector<8x128xbf16> to vector<8x4xbf16>
    %c0_47 = arith.constant 0 : index
    %c0_48 = arith.constant 0 : index
    %67 = vector.load %arg15[%c0_47, %c0_48] : memref<8x132xbf16, #tpu.memory_space<vmem>>, vector<8x4xbf16>
    tpu.vector_store %arg15[%c0_47, %c0_48], %66 {strides = array<i32>} : memref<8x132xbf16, #tpu.memory_space<vmem>>, vector<8x4xbf16>,
    return
  }
  func.func @transform_0(%arg0: i32, %arg1: i32) -> (i32, i32, i32) {
    %c0_i32 = arith.constant 0 : i32
    %c0_i32_0 = arith.constant 0 : i32
    return %arg0, %c0_i32, %arg1 : i32, i32, i32
  }
  func.func @transform_1(%arg0: i32, %arg1: i32) -> (i32, i32) {
    %c0_i32 = arith.constant 0 : i32
    %c0_i32_0 = arith.constant 0 : i32
    %c0_i32_1 = arith.constant 0 : i32
    return %c0_i32, %c0_i32_0 : i32, i32
  }
  func.func @transform_2(%arg0: i32, %arg1: i32) -> (i32, i32) {
    %c0_i32 = arith.constant 0 : i32
    %c0_i32_0 = arith.constant 0 : i32
    %c0_i32_1 = arith.constant 0 : i32
    return %c0_i32, %c0_i32_0 : i32, i32
  }
  func.func @transform_3(%arg0: i32, %arg1: i32) -> (i32, i32) {
    %c0_i32 = arith.constant 0 : i32
    %c0_i32_0 = arith.constant 0 : i32
    %c0_i32_1 = arith.constant 0 : i32
    return %c0_i32, %c0_i32_0 : i32, i32
  }
  func.func @transform_4(%arg0: i32, %arg1: i32) -> (i32, i32) {
    %c0_i32 = arith.constant 0 : i32
    %c0_i32_0 = arith.constant 0 : i32
    %c0_i32_1 = arith.constant 0 : i32
    return %c0_i32, %c0_i32_0 : i32, i32
  }
  func.func @transform_5(%arg0: i32, %arg1: i32) -> (i32, i32) {
    %c0_i32 = arith.constant 0 : i32
    %c0_i32_0 = arith.constant 0 : i32
    %c0_i32_1 = arith.constant 0 : i32
    return %c0_i32, %c0_i32_0 : i32, i32
  }
  func.func @transform_6(%arg0: i32, %arg1: i32) -> (i32, i32) {
    %c0_i32 = arith.constant 0 : i32
    %c0_i32_0 = arith.constant 0 : i32
    %c0_i32_1 = arith.constant 0 : i32
    return %c0_i32, %c0_i32_0 : i32, i32
  }
  func.func @transform_7(%arg0: i32, %arg1: i32) -> (i32, i32) {
    %c0_i32 = arith.constant 0 : i32
    %c0_i32_0 = arith.constant 0 : i32
    %c0_i32_1 = arith.constant 0 : i32
    return %c0_i32, %c0_i32_0 : i32, i32
  }
  func.func @transform_8(%arg0: i32, %arg1: i32) -> (i32, i32) {
    %c0_i32 = arith.constant 0 : i32
    %c0_i32_0 = arith.constant 0 : i32
    %c0_i32_1 = arith.constant 0 : i32
    return %c0_i32, %c0_i32_0 : i32, i32
  }
  func.func @transform_9(%arg0: i32, %arg1: i32) -> (i32, i32) {
    %c0_i32 = arith.constant 0 : i32
    %c0_i32_0 = arith.constant 0 : i32
    %c0_i32_1 = arith.constant 0 : i32
    return %c0_i32, %c0_i32_0 : i32, i32
  }
  func.func @transform_10(%arg0: i32, %arg1: i32) -> (i32, i32) {
    %c0_i32 = arith.constant 0 : i32
    %c0_i32_0 = arith.constant 0 : i32
    %c0_i32_1 = arith.constant 0 : i32
    return %c0_i32, %c0_i32_0 : i32, i32
  }
  func.func @transform_11(%arg0: i32, %arg1: i32) -> (i32, i32, i32) {
    %c0_i32 = arith.constant 0 : i32
    %c0_i32_0 = arith.constant 0 : i32
    return %arg0, %c0_i32, %arg1 : i32, i32, i32
  }
}

</mosaic_0001>

<llo_original>
// kernel: tpu_custom_call.1
$region0: #{tpu_custom_call.1}
  #allocation0 [shape = 'u32[]', space=smem, size = 0x4, offset = 0x4, fixed_abs, tag = 'smem constant byte address 0x4 - core index']
  #allocation1 [shape = 'u32[72,128]{1,0:T(1,128)}', space=vmem, size = 0x9000, scoped, tag = 'internal scratch']
  #allocation2 [shape = 'bf16[4,132]{1,0:T(4,128)(2,1)}', space=vmem, size = 0x800, scoped, tag = 'scratch operand']
  #allocation3 [shape = 'bf16[8,132]{1,0:T(8,128)(2,1)}', space=vmem, size = 0x1000, scoped, tag = 'scratch operand']
  %s0 = inlined_call_operand.hbm [shape: f32[2,4,384], index: 0, kind: input, shape index: {}]
  %s1 = inlined_call_operand.vmem [shape: bf16[8,12], index: 1, kind: input, shape index: {}]
  %s2 = inlined_call_operand.vmem [shape: f32[8,1], index: 2, kind: input, shape index: {}]
  %s3 = inlined_call_operand.vmem [shape: f32[8,1], index: 3, kind: input, shape index: {}]
  %s4 = inlined_call_operand.vmem [shape: f32[8,1], index: 4, kind: input, shape index: {}]
  %s5 = inlined_call_operand.vmem [shape: bf16[8,24], index: 5, kind: input, shape index: {}]
  %s6 = inlined_call_operand.vmem [shape: f32[8,1], index: 6, kind: input, shape index: {}]
  %s7 = inlined_call_operand.vmem [shape: f32[8,1], index: 7, kind: input, shape index: {}]
  %s8 = inlined_call_operand.vmem [shape: f32[8,1], index: 8, kind: input, shape index: {}]
  %s9 = inlined_call_operand.vmem [shape: bf16[8,4], index: 9, kind: input, shape index: {}]
  %s10 = inlined_call_operand.vmem [shape: f32[8,1], index: 10, kind: input, shape index: {}]
  %s11 = inlined_call_operand.hbm [shape: bf16[2,8,384], index: 11, kind: output, shape index: {}]
  %s12 = sld [smem:[#allocation0]]
  $region85: #{tpu_custom_call.1} parent=0
    _
  %s14 = ssub.s32 1, %s12
  %s15 = scalar_select 0, %s14, %s12
  $region1: #{tpu_custom_call.1} parent=0
    #allocation4 [shape = 'u8[4096]{0}', space=vmem, size = 0x1000, scoped, tag = 'input window, operand 0']
    #allocation5 [shape = 's32[2]{0}', space=sflag, size = 0x8, scoped, tag = 'scoped memory for tpu_custom_call.1']
    #allocation6 [shape = 's32[2]{0}', space=sflag, size = 0x8, scoped, tag = 'scoped memory for tpu_custom_call.1']
    #allocation7 [shape = 'u8[4096]{0}', space=vmem, size = 0x1000, scoped, tag = 'output window, operand 0']
    %16 = vsyncpa [#allocation5], 0
    %s17 = scalar_lea.sflag [#allocation5], 1
    %18 = vsyncpa %s17, 0
    %19 = vsyncpa [#allocation6], 0
    %s20 = scalar_lea.sflag [#allocation6], 1
    %21 = vsyncpa %s20, 0
    loop: start=0, step=1, limit=8
    $region2: #{tpu_custom_call.1} parent=1 // loop_pre_header
      _
    $region3: #{tpu_custom_call.1} parent=1 // loop_header
      %s23 = sphi 0, %s27
      %p24 = scmp.ge.s32.totalorder %s23, 8
      %s30 = sphi 0, %s42
      %s31 = sphi 0, %s38
      %s32 = sphi 0, %s30
      %s33 = sphi 0, %s31
      %s34 = sphi 0, %s32
      %s35 = sphi 0, %s33
      %s47 = sphi 0, %s49
      %s50 = sphi 0, %s47
      %s51 = sphi 0, %s50
      %s67 = sphi 0, %s51
      %s71 = sphi 0, %s71
      %s73 = sphi 0, %s71
      %s74 = sphi 0, %s73
      %s88 = sphi 0, %s74
      %s92 = sphi 0, %s92
      %s94 = sphi 0, %s92
      %s95 = sphi 0, %s94
      %s109 = sphi 0, %s95
      %s113 = sphi 0, %s113
      %s115 = sphi 0, %s113
      %s116 = sphi 0, %s115
      %s130 = sphi 0, %s116
      %s134 = sphi 0, %s134
      %s136 = sphi 0, %s134
      %s137 = sphi 0, %s136
      %s151 = sphi 0, %s137
      %s155 = sphi 0, %s155
      %s157 = sphi 0, %s155
      %s158 = sphi 0, %s157
      %s172 = sphi 0, %s158
      %s176 = sphi 0, %s176
      %s178 = sphi 0, %s176
      %s179 = sphi 0, %s178
      %s193 = sphi 0, %s179
      %s197 = sphi 0, %s197
      %s199 = sphi 0, %s197
      %s200 = sphi 0, %s199
      %s214 = sphi 0, %s200
      %s218 = sphi 0, %s218
      %s220 = sphi 0, %s218
      %s221 = sphi 0, %s220
      %s235 = sphi 0, %s221
      %s239 = sphi 0, %s239
      %s241 = sphi 0, %s239
      %s242 = sphi 0, %s241
      %s256 = sphi 0, %s242
      %s260 = sphi 0, %s260
      %s262 = sphi 0, %s260
      %s263 = sphi 0, %s262
      %s277 = sphi 0, %s263
      %s285 = sphi 0, %s287
      %s288 = sphi 0, %s285
      %s289 = sphi 0, %s288
      %s305 = sphi 0, %s289
    $region4: #{tpu_custom_call.1} parent=1 // loop_header_branch
      %26 = sbr.rel (%p24) target = $region8
    $region5: #{tpu_custom_call.1} parent=1 // loop_body
      %s28 = ssub.s32 %s23, 1
      %s29 = ssub.s32 %s23, 2
      %s36 = sadd.s32 1, %s31
      %p37 = scmp.ge.s32.totalorder %s36, 3
      %s38 = scalar_select %p37, 0, %s36
      %s39 = sadd.s32 1, %s30
      %s40 = scalar_select %p37, %s39, %s30
      %p41 = scmp.ge.s32.totalorder %s40, 2
      %s42 = scalar_select %p41, 0, %s40
      %s43 = ssub.s32 %s30, %s42
      %s44 = ssub.s32 %s31, %s38
      %s45 = sor.u32 %s43, %s44
      %p46 = scmp.eq.s32.totalorder %s45, 0
      %s48 = sadd.s32 %s47, 1
      %s49 = scalar_select %p46, %s47, %s48
      %p52 = pneg %p46
      %p53 = scmp.eq.s32.totalorder %s23, 5
      %p54 = por %p52, %p53
      %p55 = scmp.ne.s32.totalorder %s47, %s50
      %p56 = scmp.eq.s32.totalorder %s23, 0
      %p57 = por %p55, %p56
      %p58 = scmp.ne.s32.totalorder %s47, %s50
      %p59 = scmp.eq.s32.totalorder %s28, 5
      %p60 = por %p58, %p59
      %p61 = scmp.ne.s32.totalorder %s50, %s51
      %p62 = scmp.eq.s32.totalorder %s28, 0
      %p63 = por %p61, %p62
      %p64 = scmp.ne.s32.totalorder %s50, %s51
      %p65 = scmp.eq.s32.totalorder %s29, 5
      %p66 = por %p64, %p65
      %p68 = scmp.ne.s32.totalorder %s51, %s67
      %p69 = scmp.eq.s32.totalorder %s29, 0
      %p70 = por %p68, %p69
      %s72 = sadd.s32 %s71, 1
      %p75 = scmp.eq.s32.totalorder %s23, 5
      %p76 = scmp.ne.s32.totalorder %s71, %s73
      %p77 = scmp.eq.s32.totalorder %s23, 0
      %p78 = por %p76, %p77
      %p79 = scmp.ne.s32.totalorder %s71, %s73
      %p80 = scmp.eq.s32.totalorder %s28, 5
      %p81 = por %p79, %p80
      %p82 = scmp.ne.s32.totalorder %s73, %s74
      %p83 = scmp.eq.s32.totalorder %s28, 0
      %p84 = por %p82, %p83
      %p85 = scmp.ne.s32.totalorder %s73, %s74
      %p86 = scmp.eq.s32.totalorder %s29, 5
      %p87 = por %p85, %p86
      %p89 = scmp.ne.s32.totalorder %s74, %s88
      %p90 = scmp.eq.s32.totalorder %s29, 0
      %p91 = por %p89, %p90
      %s93 = sadd.s32 %s92, 1
      %p96 = scmp.eq.s32.totalorder %s23, 5
      %p97 = scmp.ne.s32.totalorder %s92, %s94
      %p98 = scmp.eq.s32.totalorder %s23, 0
      %p99 = por %p97, %p98
      %p100 = scmp.ne.s32.totalorder %s92, %s94
      %p101 = scmp.eq.s32.totalorder %s28, 5
      %p102 = por %p100, %p101
      %p103 = scmp.ne.s32.totalorder %s94, %s95
      %p104 = scmp.eq.s32.totalorder %s28, 0
      %p105 = por %p103, %p104
      %p106 = scmp.ne.s32.totalorder %s94, %s95
      %p107 = scmp.eq.s32.totalorder %s29, 5
      %p108 = por %p106, %p107
      %p110 = scmp.ne.s32.totalorder %s95, %s109
      %p111 = scmp.eq.s32.totalorder %s29, 0
      %p112 = por %p110, %p111
      %s114 = sadd.s32 %s113, 1
      %p117 = scmp.eq.s32.totalorder %s23, 5
      %p118 = scmp.ne.s32.totalorder %s113, %s115
      %p119 = scmp.eq.s32.totalorder %s23, 0
      %p120 = por %p118, %p119
      %p121 = scmp.ne.s32.totalorder %s113, %s115
      %p122 = scmp.eq.s32.totalorder %s28, 5
      %p123 = por %p121, %p122
      %p124 = scmp.ne.s32.totalorder %s115, %s116
      %p125 = scmp.eq.s32.totalorder %s28, 0
      %p126 = por %p124, %p125
      %p127 = scmp.ne.s32.totalorder %s115, %s116
      %p128 = scmp.eq.s32.totalorder %s29, 5
      %p129 = por %p127, %p128
      %p131 = scmp.ne.s32.totalorder %s116, %s130
      %p132 = scmp.eq.s32.totalorder %s29, 0
      %p133 = por %p131, %p132
      %s135 = sadd.s32 %s134, 1
      %p138 = scmp.eq.s32.totalorder %s23, 5
      %p139 = scmp.ne.s32.totalorder %s134, %s136
      %p140 = scmp.eq.s32.totalorder %s23, 0
      %p141 = por %p139, %p140
      %p142 = scmp.ne.s32.totalorder %s134, %s136
      %p143 = scmp.eq.s32.totalorder %s28, 5
      %p144 = por %p142, %p143
      %p145 = scmp.ne.s32.totalorder %s136, %s137
      %p146 = scmp.eq.s32.totalorder %s28, 0
      %p147 = por %p145, %p146
      %p148 = scmp.ne.s32.totalorder %s136, %s137
      %p149 = scmp.eq.s32.totalorder %s29, 5
      %p150 = por %p148, %p149
      %p152 = scmp.ne.s32.totalorder %s137, %s151
      %p153 = scmp.eq.s32.totalorder %s29, 0
      %p154 = por %p152, %p153
      %s156 = sadd.s32 %s155, 1
      %p159 = scmp.eq.s32.totalorder %s23, 5
      %p160 = scmp.ne.s32.totalorder %s155, %s157
      %p161 = scmp.eq.s32.totalorder %s23, 0
      %p162 = por %p160, %p161
      %p163 = scmp.ne.s32.totalorder %s155, %s157
      %p164 = scmp.eq.s32.totalorder %s28, 5
      %p165 = por %p163, %p164
      %p166 = scmp.ne.s32.totalorder %s157, %s158
      %p167 = scmp.eq.s32.totalorder %s28, 0
      %p168 = por %p166, %p167
      %p169 = scmp.ne.s32.totalorder %s157, %s158
      %p170 = scmp.eq.s32.totalorder %s29, 5
      %p171 = por %p169, %p170
      %p173 = scmp.ne.s32.totalorder %s158, %s172
      %p174 = scmp.eq.s32.totalorder %s29, 0
      %p175 = por %p173, %p174
      %s177 = sadd.s32 %s176, 1
      %p180 = scmp.eq.s32.totalorder %s23, 5
      %p181 = scmp.ne.s32.totalorder %s176, %s178
      %p182 = scmp.eq.s32.totalorder %s23, 0
      %p183 = por %p181, %p182
      %p184 = scmp.ne.s32.totalorder %s176, %s178
      %p185 = scmp.eq.s32.totalorder %s28, 5
      %p186 = por %p184, %p185
      %p187 = scmp.ne.s32.totalorder %s178, %s179
      %p188 = scmp.eq.s32.totalorder %s28, 0
      %p189 = por %p187, %p188
      %p190 = scmp.ne.s32.totalorder %s178, %s179
      %p191 = scmp.eq.s32.totalorder %s29, 5
      %p192 = por %p190, %p191
      %p194 = scmp.ne.s32.totalorder %s179, %s193
      %p195 = scmp.eq.s32.totalorder %s29, 0
      %p196 = por %p194, %p195
      %s198 = sadd.s32 %s197, 1
      %p201 = scmp.eq.s32.totalorder %s23, 5
      %p202 = scmp.ne.s32.totalorder %s197, %s199
      %p203 = scmp.eq.s32.totalorder %s23, 0
      %p204 = por %p202, %p203
      %p205 = scmp.ne.s32.totalorder %s197, %s199
      %p206 = scmp.eq.s32.totalorder %s28, 5
      %p207 = por %p205, %p206
      %p208 = scmp.ne.s32.totalorder %s199, %s200
      %p209 = scmp.eq.s32.totalorder %s28, 0
      %p210 = por %p208, %p209
      %p211 = scmp.ne.s32.totalorder %s199, %s200
      %p212 = scmp.eq.s32.totalorder %s29, 5
      %p213 = por %p211, %p212
      %p215 = scmp.ne.s32.totalorder %s200, %s214
      %p216 = scmp.eq.s32.totalorder %s29, 0
      %p217 = por %p215, %p216
      %s219 = sadd.s32 %s218, 1
      %p222 = scmp.eq.s32.totalorder %s23, 5
      %p223 = scmp.ne.s32.totalorder %s218, %s220
      %p224 = scmp.eq.s32.totalorder %s23, 0
      %p225 = por %p223, %p224
      %p226 = scmp.ne.s32.totalorder %s218, %s220
      %p227 = scmp.eq.s32.totalorder %s28, 5
      %p228 = por %p226, %p227
      %p229 = scmp.ne.s32.totalorder %s220, %s221
      %p230 = scmp.eq.s32.totalorder %s28, 0
      %p231 = por %p229, %p230
      %p232 = scmp.ne.s32.totalorder %s220, %s221
      %p233 = scmp.eq.s32.totalorder %s29, 5
      %p234 = por %p232, %p233
      %p236 = scmp.ne.s32.totalorder %s221, %s235
      %p237 = scmp.eq.s32.totalorder %s29, 0
      %p238 = por %p236, %p237
      %s240 = sadd.s32 %s239, 1
      %p243 = scmp.eq.s32.totalorder %s23, 5
      %p244 = scmp.ne.s32.totalorder %s239, %s241
      %p245 = scmp.eq.s32.totalorder %s23, 0
      %p246 = por %p244, %p245
      %p247 = scmp.ne.s32.totalorder %s239, %s241
      %p248 = scmp.eq.s32.totalorder %s28, 5
      %p249 = por %p247, %p248
      %p250 = scmp.ne.s32.totalorder %s241, %s242
      %p251 = scmp.eq.s32.totalorder %s28, 0
      %p252 = por %p250, %p251
      %p253 = scmp.ne.s32.totalorder %s241, %s242
      %p254 = scmp.eq.s32.totalorder %s29, 5
      %p255 = por %p253, %p254
      %p257 = scmp.ne.s32.totalorder %s242, %s256
      %p258 = scmp.eq.s32.totalorder %s29, 0
      %p259 = por %p257, %p258
      %s261 = sadd.s32 %s260, 1
      %p264 = scmp.eq.s32.totalorder %s23, 5
      %p265 = scmp.ne.s32.totalorder %s260, %s262
      %p266 = scmp.eq.s32.totalorder %s23, 0
      %p267 = por %p265, %p266
      %p268 = scmp.ne.s32.totalorder %s260, %s262
      %p269 = scmp.eq.s32.totalorder %s28, 5
      %p270 = por %p268, %p269
      %p271 = scmp.ne.s32.totalorder %s262, %s263
      %p272 = scmp.eq.s32.totalorder %s28, 0
      %p273 = por %p271, %p272
      %p274 = scmp.ne.s32.totalorder %s262, %s263
      %p275 = scmp.eq.s32.totalorder %s29, 5
      %p276 = por %p274, %p275
      %p278 = scmp.ne.s32.totalorder %s263, %s277
      %p279 = scmp.eq.s32.totalorder %s29, 0
      %p280 = por %p278, %p279
      %s281 = ssub.s32 %s30, %s42
      %s282 = ssub.s32 %s31, %s38
      %s283 = sor.u32 %s281, %s282
      %p284 = scmp.eq.s32.totalorder %s283, 0
      %s286 = sadd.s32 %s285, 1
      %s287 = scalar_select %p284, %s285, %s286
      %p290 = pneg %p284
      %p291 = scmp.eq.s32.totalorder %s23, 5
      %p292 = por %p290, %p291
      %p293 = scmp.ne.s32.totalorder %s285, %s288
      %p294 = scmp.eq.s32.totalorder %s23, 0
      %p295 = por %p293, %p294
      %p296 = scmp.ne.s32.totalorder %s285, %s288
      %p297 = scmp.eq.s32.totalorder %s28, 5
      %p298 = por %p296, %p297
      %p299 = scmp.ne.s32.totalorder %s288, %s289
      %p300 = scmp.eq.s32.totalorder %s28, 0
      %p301 = por %p299, %p300
      %p302 = scmp.ne.s32.totalorder %s288, %s289
      %p303 = scmp.eq.s32.totalorder %s29, 5
      %p304 = por %p302, %p303
      %p306 = scmp.ne.s32.totalorder %s289, %s305
      %p307 = scmp.eq.s32.totalorder %s29, 0
      %p308 = por %p306, %p307
      %p309 = scmp.le.s32.totalorder 1, %s23
      %p310 = scmp.lt.s32.totalorder %s23, 7
      %p311 = pnand %p309, %p310
      %p312 = pneg %p311
      // Predicated region
      $region9: #{tpu_custom_call.1} parent=5 // pred_check
        _
      $region10: #{tpu_custom_call.1} parent=5 // pred_check_branch
        %314 = sbr.rel (%p311) target = $region12
      $region11: #{tpu_custom_call.1} parent=5 // pred_region
        %s315 = ssub.s32 %s23, 1
        // Predicated region
        $region13: #{tpu_custom_call.1} parent=11 // pred_check
          %p316 = pneg %p84
        $region14: #{tpu_custom_call.1} parent=11 // pred_check_branch
          %318 = sbr.rel (%p316) target = $region16
        $region15: #{tpu_custom_call.1} parent=11 // pred_region
          _
        $region16: #{tpu_custom_call.1} parent=11 // pred_fallthru
          _
        // Predicated region
        $region17: #{tpu_custom_call.1} parent=11 // pred_check
          %p319 = pneg %p105
        $region18: #{tpu_custom_call.1} parent=11 // pred_check_branch
          %321 = sbr.rel (%p319) target = $region20
        $region19: #{tpu_custom_call.1} parent=11 // pred_region
          _
        $region20: #{tpu_custom_call.1} parent=11 // pred_fallthru
          _
        // Predicated region
        $region21: #{tpu_custom_call.1} parent=11 // pred_check
          %p322 = pneg %p126
        $region22: #{tpu_custom_call.1} parent=11 // pred_check_branch
          %324 = sbr.rel (%p322) target = $region24
        $region23: #{tpu_custom_call.1} parent=11 // pred_region
          _
        $region24: #{tpu_custom_call.1} parent=11 // pred_fallthru
          _
        // Predicated region
        $region25: #{tpu_custom_call.1} parent=11 // pred_check
          %p325 = pneg %p147
        $region26: #{tpu_custom_call.1} parent=11 // pred_check_branch
          %327 = sbr.rel (%p325) target = $region28
        $region27: #{tpu_custom_call.1} parent=11 // pred_region
          _
        $region28: #{tpu_custom_call.1} parent=11 // pred_fallthru
          _
        // Predicated region
        $region29: #{tpu_custom_call.1} parent=11 // pred_check
          %p328 = pneg %p168
        $region30: #{tpu_custom_call.1} parent=11 // pred_check_branch
          %330 = sbr.rel (%p328) target = $region32
        $region31: #{tpu_custom_call.1} parent=11 // pred_region
          _
        $region32: #{tpu_custom_call.1} parent=11 // pred_fallthru
          _
        // Predicated region
        $region33: #{tpu_custom_call.1} parent=11 // pred_check
          %p331 = pneg %p189
        $region34: #{tpu_custom_call.1} parent=11 // pred_check_branch
          %333 = sbr.rel (%p331) target = $region36
        $region35: #{tpu_custom_call.1} parent=11 // pred_region
          _
        $region36: #{tpu_custom_call.1} parent=11 // pred_fallthru
          _
        // Predicated region
        $region37: #{tpu_custom_call.1} parent=11 // pred_check
          %p334 = pneg %p210
        $region38: #{tpu_custom_call.1} parent=11 // pred_check_branch
          %336 = sbr.rel (%p334) target = $region40
        $region39: #{tpu_custom_call.1} parent=11 // pred_region
          _
        $region40: #{tpu_custom_call.1} parent=11 // pred_fallthru
          _
        // Predicated region
        $region41: #{tpu_custom_call.1} parent=11 // pred_check
          %p337 = pneg %p231
        $region42: #{tpu_custom_call.1} parent=11 // pred_check_branch
          %339 = sbr.rel (%p337) target = $region44
        $region43: #{tpu_custom_call.1} parent=11 // pred_region
          _
        $region44: #{tpu_custom_call.1} parent=11 // pred_fallthru
          _
        // Predicated region
        $region45: #{tpu_custom_call.1} parent=11 // pred_check
          %p340 = pneg %p252
        $region46: #{tpu_custom_call.1} parent=11 // pred_check_branch
          %342 = sbr.rel (%p340) target = $region48
        $region47: #{tpu_custom_call.1} parent=11 // pred_region
          _
        $region48: #{tpu_custom_call.1} parent=11 // pred_fallthru
          _
        // Predicated region
        $region49: #{tpu_custom_call.1} parent=11 // pred_check
          %p343 = pneg %p273
        $region50: #{tpu_custom_call.1} parent=11 // pred_check_branch
          %345 = sbr.rel (%p343) target = $region52
        $region51: #{tpu_custom_call.1} parent=11 // pred_region
          _
        $region52: #{tpu_custom_call.1} parent=11 // pred_fallthru
          _
      $region12: #{tpu_custom_call.1} parent=5 // pred_fallthru
        _
      %p346 = scmp.lt.s32.totalorder %s23, 6
      // Predicated region
      $region53: #{tpu_custom_call.1} parent=5 // pred_check
        %p347 = pneg %p346
      $region54: #{tpu_custom_call.1} parent=5 // pred_check_branch
        %349 = sbr.rel (%p347) target = $region56
      $region55: #{tpu_custom_call.1} parent=5 // pred_region
        // Predicated region
        $region57: #{tpu_custom_call.1} parent=55 // pred_check
          %p350 = pneg %p57
        $region58: #{tpu_custom_call.1} parent=55 // pred_check_branch
          %352 = sbr.rel (%p350) target = $region60
        $region59: #{tpu_custom_call.1} parent=55 // pred_region
          %s353 = sand.u32 %s47, 1
          %s354 = scalar_lea.sflag [#allocation5], %s353
          %s355 = sand.u32 %s47, 1
          %s356 = smul.addr %s355, 4
          %s357 = scalar_lea.vmem [#allocation4], %s356
          %359 = vsyncadd %s354, 0
          %s360 = smul.addr %s30, 3
          %s361 = sadd.s32 %s31, %s360
          %s362 = smul.addr %s361, 4
          %s363 = scalar_lea.hbm %s0, %s362
          %s365 = sshll.u32 %s363, 4
          %s366 = int_to_ptr.hbm [resolvable:$true] %s365
          %s367 = sshll.u32 %s357, 4
          %s368 = int_to_ptr.vmem [resolvable:$true] %s367
          %370 = dma.hbm_to_vmem [thread:$0]  %s366, 64, %s368, %s354
        $region60: #{tpu_custom_call.1} parent=55 // pred_fallthru
          _
      $region56: #{tpu_custom_call.1} parent=5 // pred_fallthru
        _
      %p371 = scmp.le.s32.totalorder 1, %s23
      %p372 = scmp.lt.s32.totalorder %s23, 7
      %p373 = pnand %p371, %p372
      %p374 = pneg %p373
      // Predicated region
      $region61: #{tpu_custom_call.1} parent=5 // pred_check
        _
      $region62: #{tpu_custom_call.1} parent=5 // pred_check_branch
        %376 = sbr.rel (%p373) target = $region64
      $region63: #{tpu_custom_call.1} parent=5 // pred_region
        %s377 = ssub.s32 %s23, 1
        %s378 = sand.u32 %s50, 1
        %s379 = scalar_lea.sflag [#allocation5], %s378
        %s380 = sand.u32 %s50, 1
        %s381 = smul.addr %s380, 4
        %s382 = scalar_lea.vmem [#allocation4], %s381
        // Predicated region
        $region65: #{tpu_custom_call.1} parent=63 // pred_check
          %p383 = pneg %p63
        $region66: #{tpu_custom_call.1} parent=63 // pred_check_branch
          %385 = sbr.rel (%p383) target = $region68
        $region67: #{tpu_custom_call.1} parent=63 // pred_region
          %387 = dma.done %s379, 64
        $region68: #{tpu_custom_call.1} parent=63 // pred_fallthru
          _
        %s388 = sand.u32 %s50, 1
        %s389 = scalar_lea.sflag [#allocation5], %s388
        %s390 = sand.u32 %s50, 1
        %s391 = smul.addr %s390, 4
        %s392 = scalar_lea.vmem [#allocation4], %s391
        %p393 = pneg %p63
        %p394 = pneg %p60
        %p395 = pneg %p84
        %p396 = pneg %p81
        %p397 = pneg %p105
        %p398 = pneg %p102
        %p399 = pneg %p126
        %p400 = pneg %p123
        %p401 = pneg %p147
        %p402 = pneg %p144
        %p403 = pneg %p168
        %p404 = pneg %p165
        %p405 = pneg %p189
        %p406 = pneg %p186
        %p407 = pneg %p210
        %p408 = pneg %p207
        %p409 = pneg %p231
        %p410 = pneg %p228
        %p411 = pneg %p252
        %p412 = pneg %p249
        %p413 = pneg %p273
        %p414 = pneg %p270
        %p415 = pneg %p301
        %p416 = pneg %p298
        %s417 = sand.u32 %s288, 1
        %s418 = scalar_lea.sflag [#allocation6], %s417
        %s419 = sand.u32 %s288, 1
        %s420 = smul.addr %s419, 4
        %s421 = scalar_lea.vmem [#allocation7], %s420
        %v423 = vld [vmem:[%s382] sm:$0xf]
        %v424 = vpack.c.bf16 %v423, %v423
        %p425 = scmp.eq.s32.totalorder %s33, 0
        // Predicated region
        $region69: #{tpu_custom_call.1} parent=63 // pred_check
          %p426 = pneg %p425
        $region70: #{tpu_custom_call.1} parent=63 // pred_check_branch
          %428 = sbr.rel (%p426) target = $region72
        $region71: #{tpu_custom_call.1} parent=63 // pred_region
          %vm429 = vcmask 25600
          %430 = vst.msk [vmem:[#allocation2] sm:$0x3] %vm429, 0
          %vm431 = vcmask 27648
          %432 = vst.msk [vmem:[#allocation3] sm:$0xf] %vm431, 0
        $region72: #{tpu_custom_call.1} parent=63 // pred_fallthru
          _
        %v434 = vrot.slane %v424, 2
        %vm435 = vcmask 1041408
        %v438 = vsel %vm435, %v424, %v434
        %440 = vrot.lane.b32.xlu0 %v438, 4
        %v441 = vpop.permute.xlu0 %440
        %v442 = vrot.slane %v441, 6
        %vm443 = vcmask 31744
        %v444 = vsel %vm443, %v442, %v441
        %vm446 = vcmask 1041440
        %vm447 = vcmask 27650
        %vm448 = vmor %vm447, %vm446
        %449 = vst.msk [vmem:[#allocation2] sm:$0xf] %vm448, %v444
        %v450 = vld [vmem:[#allocation2] sm:$0xf]
        %v451 = vld [vmem:[%s1] sm:$0xf]
        %v453 = vunpack.c.l.b16 %v451
        %v454 = vpack.c.b16 %v453, %v453
        %455 = vrot.lane.b32.xlu0 %v454, 124
        %v456 = vpop.permute.xlu0 %455
        %458 = vst [vmem:[#allocation1] ss:$4 sm:$0xff] %v450
        %v459 = vld.sshfl [vmem:[#allocation1] sm:$0xff pattern:$0x73625140]
        %v461 = vld.sshfl [vmem:[#allocation1 + $0x8] sm:$0xff pattern:$0x73625140]
        %463 = vrot.lane.b32.xlu0 %v459, 126
        %v464 = vpop.permute.xlu0 %463
        %465 = vrot.lane.b32.xlu0 %v461, 126
        %v466 = vpop.permute.xlu0 %465
        %vm467 = vcmask 1031168
        %v468 = vsel %vm467, %v464, %v466
        %vm469 = vcmask 31744
        %v471 = vsel %vm469, %v456, 0
        %v474 = vsel %vm435, %v468, 0
        %476 = vmatpush.bf16.msra.mxu0 0
        %477 = vmatpush.bf16.msra.mxu0 0
        %478 = vmatpush.bf16.msra.mxu0 0
        %479 = vmatpush.bf16.msra.mxu0 0
        %480 = vmatpush.bf16.msra.mxu0 0
        %481 = vmatpush.bf16.msra.mxu0 0
        %482 = vmatpush.bf16.msra.mxu0 0
        %483 = vmatpush.bf16.msra.mxu0 %v474
        %484 = vmatmul.bf16.gmra.mxu0 %v471
        %v485 = vpop.f32.mrf.mxu0
        %v486 = vadd.f32 0.0, %v485
        %v487 = vpop.f32.mrf.mxu0
        %488 = vdwg.mxu0
        %v490 = vsel %vm469, %v451, 0
        %v492 = vsel %vm435, %v450, 0
        %494 = vmatpush.bf16.msra.mxu0 0
        %495 = vmatpush.bf16.msra.mxu0 0
        %496 = vmatpush.bf16.msra.mxu0 0
        %497 = vmatpush.bf16.msra.mxu0 0
        %498 = vmatpush.bf16.msra.mxu0 0
        %499 = vmatpush.bf16.msra.mxu0 0
        %500 = vmatpush.bf16.msra.mxu0 0
        %501 = vmatpush.bf16.msra.mxu0 %v492
        %502 = vmatmul.bf16.gmra.mxu0 %v490
        %v503 = vpop.f32.mrf.mxu0
        %v504 = vadd.f32 %v486, %v503
        %v505 = vpop.f32.mrf.mxu0
        %506 = vdwg.mxu0
        %v507 = vld [vmem:[%s1] sm:$0xf]
        %v509 = vunpack.c.l.b16 %v507
        %v510 = vpack.c.b16 %v509, %v509
        %511 = vrot.lane.b32.xlu0 %v510, 120
        %v512 = vpop.permute.xlu0 %511
        %513 = vst [vmem:[#allocation1] ss:$4 sm:$0xff] %v450
        %v514 = vld.sshfl [vmem:[#allocation1] sm:$0xff pattern:$0x73625140]
        %v516 = vld.sshfl [vmem:[#allocation1 + $0x8] sm:$0xff pattern:$0x73625140]
        %518 = vrot.lane.b32.xlu0 %v514, 124
        %v519 = vpop.permute.xlu0 %518
        %520 = vrot.lane.b32.xlu0 %v516, 124
        %v521 = vpop.permute.xlu0 %520
        %vm522 = vcmask 1014784
        %v523 = vsel %vm522, %v519, %v521
        %v525 = vsel %vm469, %v512, 0
        %v528 = vsel %vm435, %v523, 0
        %530 = vmatpush.bf16.msra.mxu0 0
        %531 = vmatpush.bf16.msra.mxu0 0
        %532 = vmatpush.bf16.msra.mxu0 0
        %533 = vmatpush.bf16.msra.mxu0 0
        %534 = vmatpush.bf16.msra.mxu0 0
        %535 = vmatpush.bf16.msra.mxu0 0
        %536 = vmatpush.bf16.msra.mxu0 0
        %537 = vmatpush.bf16.msra.mxu0 %v528
        %538 = vmatmul.bf16.gmra.mxu0 %v525
        %v539 = vpop.f32.mrf.mxu0
        %v540 = vadd.f32 0.0, %v539
        %v541 = vpop.f32.mrf.mxu0
        %542 = vdwg.mxu0
        %v543 = vadd.f32 %v504, %v540
        %v544 = vld [vmem:[%s2] sm:$0xff]
        %546 = vset.pattern.permute.xlu0 0
        %547 = vperm.xlu0 %546, %v544
        %v548 = vpop.permute.xlu0 %547
        %v550 = vadd.f32 %v543, %v548
        %v551 = vtanh.pop %v550
        %v552 = vld [vmem:[%s3] sm:$0xff]
        %554 = vset.pattern.permute.xlu0 0
        %555 = vperm.xlu0 %554, %v552
        %v556 = vpop.permute.xlu0 %555
        %v558 = vmul.f32 %v551, %v556
        %v559 = vld [vmem:[%s4] sm:$0xff]
        %561 = vset.pattern.permute.xlu0 0
        %562 = vperm.xlu0 %561, %v559
        %v563 = vpop.permute.xlu0 %562
        %v565 = vadd.f32 %v558, %v563
        %v566 = vpack.c.bf16 %v565, %v565
        %568 = vrot.lane.b32.xlu0 %v566, 4
        %v569 = vpop.permute.xlu0 %568
        %v570 = vrot.slane %v569, 4
        %v571 = vsel %vm443, %v570, %v569
        %vm573 = vcmask 1043488
        %vm574 = vcmask 31748
        %vm575 = vmor %vm574, %vm573
        %576 = vst.msk [vmem:[#allocation3] sm:$0xff] %vm575, %v571
        %v577 = vld [vmem:[#allocation3] sm:$0xff]
        %v578 = vld [vmem:[%s5] sm:$0xf]
        %v580 = vunpack.c.l.b16 %v578
        %v581 = vpack.c.b16 %v580, %v580
        %582 = vrot.lane.b32.xlu0 %v581, 120
        %v583 = vpop.permute.xlu0 %582
        %v585 = vunpack.c.l.b16 %v577
        %v586 = vunpack.c.h.b16 %v577
        %v587 = vpack.c.b16 %v585, %v585
        %v588 = vpack.c.b16 %v586, %v586
        %589 = vrot.lane.b32.xlu0 %v587, 126
        %v590 = vpop.permute.xlu0 %589
        %591 = vrot.lane.b32.xlu0 %v588, 126
        %v592 = vpop.permute.xlu0 %591
        %v593 = vsel %vm467, %v590, %v592
        %vm594 = vcmask 64512
        %v596 = vsel %vm594, %v583, 0
        %vm598 = vcmask 1043456
        %v600 = vsel %vm598, %v593, 0
        %602 = vmatpush.bf16.msra.mxu0 0
        %603 = vmatpush.bf16.msra.mxu0 0
        %604 = vmatpush.bf16.msra.mxu0 0
        %605 = vmatpush.bf16.msra.mxu0 0
        %606 = vmatpush.bf16.msra.mxu0 0
        %607 = vmatpush.bf16.msra.mxu0 0
        %608 = vmatpush.bf16.msra.mxu0 0
        %609 = vmatpush.bf16.msra.mxu0 %v600
        %610 = vmatmul.bf16.gmra.mxu0 %v596
        %v611 = vpop.f32.mrf.mxu0
        %v612 = vadd.f32 0.0, %v611
        %v613 = vpop.f32.mrf.mxu0
        %614 = vdwg.mxu0
        %v616 = vsel %vm594, %v578, 0
        %v619 = vsel %vm598, %v577, 0
        %621 = vmatpush.bf16.msra.mxu0 0
        %622 = vmatpush.bf16.msra.mxu0 0
        %623 = vmatpush.bf16.msra.mxu0 0
        %624 = vmatpush.bf16.msra.mxu0 0
        %625 = vmatpush.bf16.msra.mxu0 0
        %626 = vmatpush.bf16.msra.mxu0 0
        %627 = vmatpush.bf16.msra.mxu0 0
        %628 = vmatpush.bf16.msra.mxu0 %v619
        %629 = vmatmul.bf16.gmra.mxu0 %v616
        %v630 = vpop.f32.mrf.mxu0
        %v631 = vadd.f32 %v612, %v630
        %v632 = vpop.f32.mrf.mxu0
        %633 = vdwg.mxu0
        %634 = vrot.lane.b32.xlu0 %v581, 112
        %v635 = vpop.permute.xlu0 %634
        %636 = vrot.lane.b32.xlu0 %v587, 124
        %v637 = vpop.permute.xlu0 %636
        %638 = vrot.lane.b32.xlu0 %v588, 124
        %v639 = vpop.permute.xlu0 %638
        %v640 = vsel %vm522, %v637, %v639
        %v642 = vsel %vm594, %v635, 0
        %v645 = vsel %vm598, %v640, 0
        %647 = vmatpush.bf16.msra.mxu0 0
        %648 = vmatpush.bf16.msra.mxu0 0
        %649 = vmatpush.bf16.msra.mxu0 0
        %650 = vmatpush.bf16.msra.mxu0 0
        %651 = vmatpush.bf16.msra.mxu0 0
        %652 = vmatpush.bf16.msra.mxu0 0
        %653 = vmatpush.bf16.msra.mxu0 0
        %654 = vmatpush.bf16.msra.mxu0 %v645
        %655 = vmatmul.bf16.gmra.mxu0 %v642
        %v656 = vpop.f32.mrf.mxu0
        %v657 = vadd.f32 0.0, %v656
        %v658 = vpop.f32.mrf.mxu0
        %659 = vdwg.mxu0
        %v660 = vadd.f32 %v631, %v657
        %v661 = vld [vmem:[%s6] sm:$0xff]
        %663 = vset.pattern.permute.xlu0 0
        %664 = vperm.xlu0 %663, %v661
        %v665 = vpop.permute.xlu0 %664
        %v667 = vadd.f32 %v660, %v665
        %v668 = vtanh.pop %v667
        %v669 = vld [vmem:[%s7] sm:$0xff]
        %671 = vset.pattern.permute.xlu0 0
        %672 = vperm.xlu0 %671, %v669
        %v673 = vpop.permute.xlu0 %672
        %v675 = vmul.f32 %v668, %v673
        %v676 = vld [vmem:[%s8] sm:$0xff]
        %678 = vset.pattern.permute.xlu0 0
        %679 = vperm.xlu0 %678, %v676
        %v680 = vpop.permute.xlu0 %679
        %v682 = vadd.f32 %v675, %v680
        %v683 = vld [vmem:[%s9] sm:$0xf]
        %v684 = vld [vmem:[%s10] sm:$0xff]
        %686 = vset.pattern.permute.xlu0 0
        %687 = vperm.xlu0 %686, %v684
        %v688 = vpop.permute.xlu0 %687
        %v691 = vsel %vm469, %v683, 0
        %v693 = vsel %vm435, %v424, 0
        %695 = vmatpush.bf16.msra.mxu0 0
        %696 = vmatpush.bf16.msra.mxu0 0
        %697 = vmatpush.bf16.msra.mxu0 0
        %698 = vmatpush.bf16.msra.mxu0 0
        %699 = vmatpush.bf16.msra.mxu0 0
        %700 = vmatpush.bf16.msra.mxu0 0
        %701 = vmatpush.bf16.msra.mxu0 0
        %702 = vmatpush.bf16.msra.mxu0 %v693
        %703 = vmatmul.bf16.gmra.mxu0 %v691
        %v704 = vpop.f32.mrf.mxu0
        %v705 = vadd.f32 %v688, %v704
        %v706 = vpop.f32.mrf.mxu0
        %707 = vdwg.mxu0
        %v708 = vadd.f32 %v682, %v705
        %v709 = vtanh.pop %v708
        %v710 = vpack.c.bf16 %v709, %v709
        %711 = vst [vmem:[%s421] sm:$0xf] %v710
        %vm713 = vcmask 25600
        %714 = vst.msk [vmem:[#allocation2] sm:$0x3] %vm713, %v441
        %vm716 = vcmask 27648
        %717 = vst.msk [vmem:[#allocation3] sm:$0xf] %vm716, %v569
        %s718 = sand.u32 %s288, 1
        %s719 = scalar_lea.sflag [#allocation6], %s718
        %s720 = sand.u32 %s288, 1
        %s721 = smul.addr %s720, 4
        %s722 = scalar_lea.vmem [#allocation7], %s721
        // Predicated region
        $region73: #{tpu_custom_call.1} parent=63 // pred_check
          %p723 = pneg %p298
        $region74: #{tpu_custom_call.1} parent=63 // pred_check_branch
          %725 = sbr.rel (%p723) target = $region76
        $region75: #{tpu_custom_call.1} parent=63 // pred_region
          %727 = vsyncadd %s719, 0
          %s728 = smul.addr %s32, 3
          %s729 = sadd.s32 %s33, %s728
          %s730 = smul.addr %s729, 4
          %s731 = scalar_lea.hbm %s11, %s730
          %s733 = sshll.u32 %s722, 4
          %s734 = int_to_ptr.vmem [resolvable:$true] %s733
          %s735 = sshll.u32 %s731, 4
          %s736 = int_to_ptr.hbm [resolvable:$true] %s735
          %738 = dma.vmem_to_hbm [thread:$0]  %s734, 64, %s736, %s719
        $region76: #{tpu_custom_call.1} parent=63 // pred_fallthru
          _
      $region64: #{tpu_custom_call.1} parent=5 // pred_fallthru
        _
      %p739 = scmp.le.s32.totalorder 2, %s23
      // Predicated region
      $region77: #{tpu_custom_call.1} parent=5 // pred_check
        %p740 = pneg %p739
      $region78: #{tpu_custom_call.1} parent=5 // pred_check_branch
        %742 = sbr.rel (%p740) target = $region80
      $region79: #{tpu_custom_call.1} parent=5 // pred_region
        %s743 = ssub.s32 %s23, 2
        // Predicated region
        $region81: #{tpu_custom_call.1} parent=79 // pred_check
          %p744 = pneg %p304
        $region82: #{tpu_custom_call.1} parent=79 // pred_check_branch
          %746 = sbr.rel (%p744) target = $region84
        $region83: #{tpu_custom_call.1} parent=79 // pred_region
          %s747 = sand.u32 %s289, 1
          %s748 = scalar_lea.sflag [#allocation6], %s747
          %s749 = sand.u32 %s289, 1
          %s750 = smul.addr %s749, 4
          %s751 = scalar_lea.vmem [#allocation7], %s750
          %753 = dma.done %s748, 64
        $region84: #{tpu_custom_call.1} parent=79 // pred_fallthru
          _
      $region80: #{tpu_custom_call.1} parent=5 // pred_fallthru
        _
    $region6: #{tpu_custom_call.1} parent=1 // loop_footer
      %s27 = sadd.s32 1, %s23
    $region7: #{tpu_custom_call.1} parent=1 // loop_footer_branch
      %22 = sbr.rel target = $region3
    $region8: #{tpu_custom_call.1} parent=1 // loop_exit
      _
    %754 = vsyncpa [#allocation5], 1
    %s755 = scalar_lea.sflag [#allocation5], 1
    %756 = vsyncpa %s755, 1
    %757 = vsyncpa [#allocation6], 1
    %s758 = scalar_lea.sflag [#allocation6], 1
    %759 = vsyncpa %s758, 1

</llo_original>
